<compile_context>
chip_gen: v6e
topology: v6e:2x2x1
jax: 0.10.0
libtpu: 0.0.40
codegen_flags: <defaults>
</compile_context>

<pallas_src>
import jax
import jax.numpy as jnp
import numpy as np
from jax.experimental import pallas as pl
from jax.experimental.pallas import tpu as pltpu

IN_FEATURES = 784          # 1*28*28 (PyTorch view order)
CODE_DIM = 256
TM_MAX = 1024              # row tile (batch) cap; ~12 MB double-buffered working set


def _round_up(a, b):
    return ((a + b - 1) // b) * b


def _ae_fc_kernel(x_ref, w1_ref, b1_ref, w2_ref, b2_ref, codes_ref, dec_ref):
    """Fused encoder+decoder for one batch tile.

    x_ref:  (TM, 784)  f32   flattened input tile (cast to bf16 in-kernel)
    w1_ref: (784, 256) bf16  encoder weight (transposed)
    b1_ref: (1, 256)   f32   encoder bias
    w2_ref: (256, 784) bf16  decoder weight (transposed)
    b2_ref: (1, 784)   f32   decoder bias
    codes_ref: (TM, 256) f32
    dec_ref:   (TM, 784) f32
    """
    x = x_ref[...].astype(jnp.bfloat16)
    # Encoder: tanh(x @ W1 + b1).  bf16 operands, f32 accumulate; bias/tanh in f32.
    h = jnp.dot(x, w1_ref[...], preferred_element_type=jnp.float32)
    codes = jnp.tanh(h + b1_ref[...])
    codes_ref[...] = codes.astype(codes_ref.dtype)
    # Decoder: codes @ W2 + b2 (no activation, matches AE_Decoder_Fc).
    dec = jnp.dot(codes.astype(w2_ref.dtype), w2_ref[...],
                  preferred_element_type=jnp.float32) + b2_ref[...]
    dec_ref[...] = dec.astype(dec_ref.dtype)


def autoencoder_forward(x_nchw, params):
    """x_nchw: (N, 1, 28, 28) float32.  Returns (codes (N,256), decoded (N,1,28,28))."""
    w1, b1, w2, b2 = params
    n = x_nchw.shape[0]

    # ---- batch tiling (no feature padding; only pad batch to a tile multiple) ----
    n_pad8 = _round_up(max(n, 1), 8)
    if n_pad8 >= 16:
        # Aim for >= 2 grid steps so v7x megacore ("parallel") can split the
        # batch across both TensorCores; cap the tile at TM_MAX.
        tm = min(TM_MAX, _round_up(-(-n_pad8 // 2), 8))
    else:
        tm = n_pad8
    n_pad = _round_up(n_pad8, tm)
    grid = (n_pad // tm,)

    x2d = x_nchw.reshape(n, IN_FEATURES).astype(jnp.float32)
    if n_pad != n:
        x2d = jnp.pad(x2d, ((0, n_pad - n), (0, 0)))

    # Weights kept resident in VMEM across all grid steps (bf16 operands).
    w1_b = w1.astype(jnp.bfloat16)                               # (784, 256)
    b1_f = b1.astype(jnp.float32).reshape(1, CODE_DIM)           # (1, 256)
    w2_b = w2.astype(jnp.bfloat16)                               # (256, 784)
    b2_f = b2.astype(jnp.float32).reshape(1, IN_FEATURES)        # (1, 784)

    flops = 4 * n_pad * IN_FEATURES * CODE_DIM                   # two matmuls
    bytes_accessed = (x2d.size * 4 + w1_b.size * 2 + w2_b.size * 2
                      + b1_f.size * 4 + b2_f.size * 4
                      + n_pad * CODE_DIM * 4 + n_pad * IN_FEATURES * 4)

    codes_p, dec_p = pl.pallas_call(
        _ae_fc_kernel,
        out_shape=(
            jax.ShapeDtypeStruct((n_pad, CODE_DIM), jnp.float32),
            jax.ShapeDtypeStruct((n_pad, IN_FEATURES), jnp.float32),
        ),
        grid_spec=pltpu.PrefetchScalarGridSpec(
            num_scalar_prefetch=0,
            grid=grid,
            in_specs=[
                # Batch-tiled activations; 784 equals the full array dim, so the
                # (8,128) divisibility rule does not apply to the lane axis.
                pl.BlockSpec((tm, IN_FEATURES), lambda i: (i, 0)),
                # Weights / biases: full blocks, same index every step -> stay
                # resident in VMEM across the whole grid.
                pl.BlockSpec((IN_FEATURES, CODE_DIM), lambda i: (0, 0)),
                pl.BlockSpec((1, CODE_DIM), lambda i: (0, 0)),
                pl.BlockSpec((CODE_DIM, IN_FEATURES), lambda i: (0, 0)),
                pl.BlockSpec((1, IN_FEATURES), lambda i: (0, 0)),
            ],
            out_specs=(
                pl.BlockSpec((tm, CODE_DIM), lambda i: (i, 0)),
                pl.BlockSpec((tm, IN_FEATURES), lambda i: (i, 0)),
            ),
        ),
        compiler_params=pltpu.CompilerParams(
            dimension_semantics=("parallel",),
            vmem_limit_bytes=32 << 20,
        ),
        cost_estimate=pl.CostEstimate(
            flops=flops,
            transcendentals=n_pad * CODE_DIM,
            bytes_accessed=bytes_accessed,
        ),
    )(x2d, w1_b, b1_f, w2_b, b2_f)

    codes = codes_p[:n]
    decoded = dec_p[:n].reshape(n, 1, 28, 28)
    return codes, decoded


def init_params(key):
    """Deterministic init matching the PyTorch layer shapes.

    PyTorch: enc.fc = Linear(784, 256) -> W (256,784), b (256,)
             dec.fc = Linear(256, 784) -> W (784,256), b (784,)
    Weights are stored transposed so the kernel does x @ W directly.
    nn.Linear default init ~ U(-1/sqrt(fan_in), 1/sqrt(fan_in)).
    """
    k1, k2, k3, k4 = jax.random.split(key, 4)
    bound1 = 1.0 / np.sqrt(IN_FEATURES)
    bound2 = 1.0 / np.sqrt(CODE_DIM)
    w1 = jax.random.uniform(k1, (IN_FEATURES, CODE_DIM), jnp.float32, -bound1, bound1)
    b1 = jax.random.uniform(k2, (1, CODE_DIM), jnp.float32, -bound1, bound1)
    w2 = jax.random.uniform(k3, (CODE_DIM, IN_FEATURES), jnp.float32, -bound2, bound2)
    b2 = jax.random.uniform(k4, (1, IN_FEATURES), jnp.float32, -bound2, bound2)
    return w1, b1, w2, b2


def _reference_forward(x_nchw, params):
    """Pure-JAX f32 reference for correctness checking."""
    w1, b1, w2, b2 = params
    n = x_nchw.shape[0]
    x2d = x_nchw.reshape(n, IN_FEATURES)
    codes = jnp.tanh(x2d @ w1 + b1)
    dec = (codes @ w2 + b2).reshape(n, 1, 28, 28)
    return codes, dec


# TODO(synk): the conv-based AE_Encoder/AE_Decoder path (dim != 256) is not
# implemented; this kernel covers the dim == 256 fully-connected path only.

if __name__ == "__main__":
    key = jax.random.PRNGKey(0)
    k_params, k_x = jax.random.split(key)

    params = init_params(k_params)
    # NCHW input, same as the PyTorch module expects (MNIST-style 1x28x28).
    x = jax.random.normal(k_x, (2, 1, 28, 28), dtype=jnp.float32)

    codes, decoded = autoencoder_forward(x, params)
    codes = jax.block_until_ready(codes)
    decoded = jax.block_until_ready(decoded)

    # Sanity check against a pure-JAX f32 reference.  Tolerance is relaxed to
    # account for bf16 matmul operands (f32 accumulation).
    ref_codes, ref_decoded = _reference_forward(x, params)
    assert codes.shape == (2, CODE_DIM)
    assert decoded.shape == (2, 1, 28, 28)
    np.testing.assert_allclose(np.asarray(codes), np.asarray(ref_codes),
                               rtol=3e-2, atol=3e-2)
    np.testing.assert_allclose(np.asarray(decoded), np.asarray(ref_decoded),
                               rtol=3e-2, atol=3e-2)

    print("KERNEL_OK")
</pallas_src>

<mosaic_0001>
module attributes {stable_mosaic.version = 11 : i64} {
  func.func @_ae_fc_kernel(%arg0: i32, %arg1: memref<8x784xf32, #tpu.memory_space<vmem>>, %arg2: memref<784x256xbf16, #tpu.memory_space<vmem>>, %arg3: memref<1x256xf32, #tpu.memory_space<vmem>>, %arg4: memref<256x784xbf16, #tpu.memory_space<vmem>>, %arg5: memref<1x784xf32, #tpu.memory_space<vmem>>, %arg6: memref<8x256xf32, #tpu.memory_space<vmem>>, %arg7: memref<8x784xf32, #tpu.memory_space<vmem>>) attributes {dimension_semantics = [#tpu.dimension_semantics<parallel>], iteration_bounds = array<i64: 1>, scalar_prefetch = 0 : i64, scratch_operands = 0 : i64, tpu.core_type = #tpu.core_type<tc>, window_params = [{transform_indices = @transform_0, window_bounds = array<i64: 8, 784>}, {pipeline_mode = #tpu.pipeline_mode<synchronous>, transform_indices = @transform_1, window_bounds = array<i64: 784, 256>}, {pipeline_mode = #tpu.pipeline_mode<synchronous>, transform_indices = @transform_2, window_bounds = array<i64: 1, 256>}, {pipeline_mode = #tpu.pipeline_mode<synchronous>, transform_indices = @transform_3, window_bounds = array<i64: 256, 784>}, {pipeline_mode = #tpu.pipeline_mode<synchronous>, transform_indices = @transform_4, window_bounds = array<i64: 1, 784>}, {transform_indices = @transform_5, window_bounds = array<i64: 8, 256>}, {transform_indices = @transform_6, window_bounds = array<i64: 8, 784>}]} {
    %c0 = arith.constant 0 : index
    %c0_0 = arith.constant 0 : index
    %0 = vector.load %arg1[%c0, %c0_0] : memref<8x784xf32, #tpu.memory_space<vmem>>, vector<8x784xf32>
    %1 = arith.truncf %0 : vector<8x784xf32> to vector<8x784xbf16>
    %c0_1 = arith.constant 0 : index
    %c0_2 = arith.constant 0 : index
    %2 = vector.load %arg2[%c0_1, %c0_2] : memref<784x256xbf16, #tpu.memory_space<vmem>>, vector<784x256xbf16>
    %cst = arith.constant dense<0.000000e+00> : vector<8x256xf32>
    %3 = tpu.matmul %1, %2, %cst {dimension_numbers = #tpu.dot_dimension_numbers<[1], [0], [0], [1], [0, 0, 1, 1], [], []>} : vector<8x784xbf16>, vector<784x256xbf16>, vector<8x256xf32> -> vector<8x256xf32>
    %c0_3 = arith.constant 0 : index
    %c0_4 = arith.constant 0 : index
    %4 = vector.load %arg3[%c0_3, %c0_4] : memref<1x256xf32, #tpu.memory_space<vmem>>, vector<1x256xf32>
    %5 = vector.broadcast %4 : vector<1x256xf32> to vector<8x256xf32>
    %6 = arith.addf %3, %5 : vector<8x256xf32>
    %7 = math.tanh %6 : vector<8x256xf32>
    %c0_5 = arith.constant 0 : index
    %c0_6 = arith.constant 0 : index
    %8 = vector.load %arg6[%c0_5, %c0_6] : memref<8x256xf32, #tpu.memory_space<vmem>>, vector<8x256xf32>
    tpu.vector_store %arg6[%c0_5, %c0_6], %7 {strides = array<i32>} : memref<8x256xf32, #tpu.memory_space<vmem>>, vector<8x256xf32>,
    %9 = arith.truncf %7 : vector<8x256xf32> to vector<8x256xbf16>
    %c0_7 = arith.constant 0 : index
    %c0_8 = arith.constant 0 : index
    %10 = vector.load %arg4[%c0_7, %c0_8] : memref<256x784xbf16, #tpu.memory_space<vmem>>, vector<256x784xbf16>
    %cst_9 = arith.constant dense<0.000000e+00> : vector<8x784xf32>
    %11 = tpu.matmul %9, %10, %cst_9 {dimension_numbers = #tpu.dot_dimension_numbers<[1], [0], [0], [1], [0, 0, 1, 1], [], []>} : vector<8x256xbf16>, vector<256x784xbf16>, vector<8x784xf32> -> vector<8x784xf32>
    %c0_10 = arith.constant 0 : index
    %c0_11 = arith.constant 0 : index
    %12 = vector.load %arg5[%c0_10, %c0_11] : memref<1x784xf32, #tpu.memory_space<vmem>>, vector<1x784xf32>
    %13 = vector.broadcast %12 : vector<1x784xf32> to vector<8x784xf32>
    %14 = arith.addf %11, %13 : vector<8x784xf32>
    %c0_12 = arith.constant 0 : index
    %c0_13 = arith.constant 0 : index
    %15 = vector.load %arg7[%c0_12, %c0_13] : memref<8x784xf32, #tpu.memory_space<vmem>>, vector<8x784xf32>
    tpu.vector_store %arg7[%c0_12, %c0_13], %14 {strides = array<i32>} : memref<8x784xf32, #tpu.memory_space<vmem>>, vector<8x784xf32>,
    return
  }
  func.func @transform_0(%arg0: i32) -> (i32, i32) {
    %c0_i32 = arith.constant 0 : i32
    %c0_i32_0 = arith.constant 0 : i32
    return %arg0, %c0_i32 : i32, i32
  }
  func.func @transform_1(%arg0: i32) -> (i32, i32) {
    %c0_i32 = arith.constant 0 : i32
    %c0_i32_0 = arith.constant 0 : i32
    %c0_i32_1 = arith.constant 0 : i32
    return %c0_i32, %c0_i32_0 : i32, i32
  }
  func.func @transform_2(%arg0: i32) -> (i32, i32) {
    %c0_i32 = arith.constant 0 : i32
    %c0_i32_0 = arith.constant 0 : i32
    %c0_i32_1 = arith.constant 0 : i32
    return %c0_i32, %c0_i32_0 : i32, i32
  }
  func.func @transform_3(%arg0: i32) -> (i32, i32) {
    %c0_i32 = arith.constant 0 : i32
    %c0_i32_0 = arith.constant 0 : i32
    %c0_i32_1 = arith.constant 0 : i32
    return %c0_i32, %c0_i32_0 : i32, i32
  }
  func.func @transform_4(%arg0: i32) -> (i32, i32) {
    %c0_i32 = arith.constant 0 : i32
    %c0_i32_0 = arith.constant 0 : i32
    %c0_i32_1 = arith.constant 0 : i32
    return %c0_i32, %c0_i32_0 : i32, i32
  }
  func.func @transform_5(%arg0: i32) -> (i32, i32) {
    %c0_i32 = arith.constant 0 : i32
    %c0_i32_0 = arith.constant 0 : i32
    return %arg0, %c0_i32 : i32, i32
  }
  func.func @transform_6(%arg0: i32) -> (i32, i32) {
    %c0_i32 = arith.constant 0 : i32
    %c0_i32_0 = arith.constant 0 : i32
    return %arg0, %c0_i32 : i32, i32
  }
}

</mosaic_0001>

<llo_original>
// kernel: tpu_custom_call.1
$region0: #{tpu_custom_call.1}
  #allocation0 [shape = 'u32[]', space=smem, size = 0x4, offset = 0x4, fixed_abs, tag = 'smem constant byte address 0x4 - core index']
  #allocation1 [shape = 'u32[144,128]{1,0:T(1,128)}', space=vmem, size = 0x12000, scoped, tag = 'internal scratch']
  %s0 = inlined_call_operand.vmem [shape: f32[8,784], index: 0, kind: input, shape index: {}]
  %s1 = inlined_call_operand.vmem [shape: bf16[784,256], index: 1, kind: input, shape index: {}]
  %s2 = inlined_call_operand.vmem [shape: f32[1,256], index: 2, kind: input, shape index: {}]
  %s3 = inlined_call_operand.vmem [shape: bf16[256,784], index: 3, kind: input, shape index: {}]
  %s4 = inlined_call_operand.vmem [shape: f32[1,784], index: 4, kind: input, shape index: {}]
  %s5 = inlined_call_operand.hbm [shape: f32[8,256], index: 5, kind: output, shape index: {0}]
  %s6 = inlined_call_operand.hbm [shape: f32[8,784], index: 6, kind: output, shape index: {1}]
  %7 = xla_tuple %s5, %s6
  %s8 = sld [smem:[#allocation0]]
  $region38: #{tpu_custom_call.1} parent=0
    _
  %s10 = ssub.s32 1, %s8
  %s11 = scalar_select 0, %s10, %s8
  $region1: #{tpu_custom_call.1} parent=0
    #allocation2 [shape = 'u8[8192]{0}', space=vmem, size = 0x2000, scoped, tag = 'output window, operand 0, single buffered']
    #allocation3 [shape = 's32[1]{0}', space=sflag, size = 0x4, scoped, tag = 'scoped memory for tpu_custom_call.1']
    #allocation4 [shape = 'u8[28672]{0}', space=vmem, size = 0x7000, scoped, tag = 'output window, operand 1, single buffered']
    #allocation5 [shape = 's32[1]{0}', space=sflag, size = 0x4, scoped, tag = 'scoped memory for tpu_custom_call.1']
    %12 = vsyncpa [#allocation3], 0
    %13 = vsyncpa [#allocation5], 0
    // Predicated region
    $region2: #{tpu_custom_call.1} parent=1 // pred_check
      _
    $region3: #{tpu_custom_call.1} parent=1 // pred_check_branch
      %15 = sbr.rel (0) target = $region5
    $region4: #{tpu_custom_call.1} parent=1 // pred_region
      _
    $region5: #{tpu_custom_call.1} parent=1 // pred_fallthru
      _
    // Predicated region
    $region6: #{tpu_custom_call.1} parent=1 // pred_check
      _
    $region7: #{tpu_custom_call.1} parent=1 // pred_check_branch
      %17 = sbr.rel (0) target = $region9
    $region8: #{tpu_custom_call.1} parent=1 // pred_region
      _
    $region9: #{tpu_custom_call.1} parent=1 // pred_fallthru
      _
    // Predicated region
    $region10: #{tpu_custom_call.1} parent=1 // pred_check
      _
    $region11: #{tpu_custom_call.1} parent=1 // pred_check_branch
      %19 = sbr.rel (0) target = $region13
    $region12: #{tpu_custom_call.1} parent=1 // pred_region
      _
    $region13: #{tpu_custom_call.1} parent=1 // pred_fallthru
      _
    // Predicated region
    $region14: #{tpu_custom_call.1} parent=1 // pred_check
      _
    $region15: #{tpu_custom_call.1} parent=1 // pred_check_branch
      %21 = sbr.rel (0) target = $region17
    $region16: #{tpu_custom_call.1} parent=1 // pred_region
      _
    $region17: #{tpu_custom_call.1} parent=1 // pred_fallthru
      _
    // Predicated region
    $region18: #{tpu_custom_call.1} parent=1 // pred_check
      _
    $region19: #{tpu_custom_call.1} parent=1 // pred_check_branch
      %23 = sbr.rel (0) target = $region21
    $region20: #{tpu_custom_call.1} parent=1 // pred_region
      _
    $region21: #{tpu_custom_call.1} parent=1 // pred_fallthru
      _
    %v25 = vld [vmem:[%s0] sm:$0xff]
    %v26 = vld [vmem:[%s0 + $0x8] sm:$0xff]
    %v27 = vld [vmem:[%s0 + $0x10] sm:$0xff]
    %v28 = vld [vmem:[%s0 + $0x18] sm:$0xff]
    %v29 = vld [vmem:[%s0 + $0x20] sm:$0xff]
    %v30 = vld [vmem:[%s0 + $0x28] sm:$0xff]
    %v31 = vld [vmem:[%s0 + $0x30] sm:$0xff]
    %v32 = vpack.c.bf16 %v25, %v25
    %v33 = vpack.c.bf16 %v26, %v26
    %v34 = vpack.c.bf16 %v27, %v27
    %v35 = vpack.c.bf16 %v28, %v28
    %v36 = vpack.c.bf16 %v29, %v29
    %v37 = vpack.c.bf16 %v30, %v30
    %v38 = vpack.c.bf16 %v31, %v31
    %v39 = vld [vmem:[%s1] sm:$0xff]
    %v40 = vld [vmem:[%s1 + $0x8] sm:$0xff]
    %v41 = vld [vmem:[%s1 + $0x10] sm:$0xff]
    %v42 = vld [vmem:[%s1 + $0x18] sm:$0xff]
    %v43 = vld [vmem:[%s1 + $0x20] sm:$0xff]
    %v44 = vld [vmem:[%s1 + $0x28] sm:$0xff]
    %v45 = vld [vmem:[%s1 + $0x30] sm:$0xff]
    %v46 = vld [vmem:[%s1 + $0x38] sm:$0xff]
    %v47 = vld [vmem:[%s1 + $0x40] sm:$0xff]
    %v48 = vld [vmem:[%s1 + $0x48] sm:$0xff]
    %v49 = vld [vmem:[%s1 + $0x50] sm:$0xff]
    %v50 = vld [vmem:[%s1 + $0x58] sm:$0xff]
    %v51 = vld [vmem:[%s1 + $0x60] sm:$0xff]
    %v52 = vld [vmem:[%s1 + $0x68] sm:$0xff]
    %v53 = vld [vmem:[%s1 + $0x70] sm:$0xff]
    %v54 = vld [vmem:[%s1 + $0x78] sm:$0xff]
    %v55 = vld [vmem:[%s1 + $0x80] sm:$0xff]
    %v56 = vld [vmem:[%s1 + $0x88] sm:$0xff]
    %v57 = vld [vmem:[%s1 + $0x90] sm:$0xff]
    %v58 = vld [vmem:[%s1 + $0x98] sm:$0xff]
    %v59 = vld [vmem:[%s1 + $0xa0] sm:$0xff]
    %v60 = vld [vmem:[%s1 + $0xa8] sm:$0xff]
    %v61 = vld [vmem:[%s1 + $0xb0] sm:$0xff]
    %v62 = vld [vmem:[%s1 + $0xb8] sm:$0xff]
    %v63 = vld [vmem:[%s1 + $0xc0] sm:$0xff]
    %v64 = vld [vmem:[%s1 + $0xc8] sm:$0xff]
    %v65 = vld [vmem:[%s1 + $0xd0] sm:$0xff]
    %v66 = vld [vmem:[%s1 + $0xd8] sm:$0xff]
    %v67 = vld [vmem:[%s1 + $0xe0] sm:$0xff]
    %v68 = vld [vmem:[%s1 + $0xe8] sm:$0xff]
    %v69 = vld [vmem:[%s1 + $0xf0] sm:$0xff]
    %v70 = vld [vmem:[%s1 + $0xf8] sm:$0xff]
    %v71 = vld [vmem:[%s1 + $0x100] sm:$0xff]
    %v72 = vld [vmem:[%s1 + $0x108] sm:$0xff]
    %v73 = vld [vmem:[%s1 + $0x110] sm:$0xff]
    %v74 = vld [vmem:[%s1 + $0x118] sm:$0xff]
    %v75 = vld [vmem:[%s1 + $0x120] sm:$0xff]
    %v76 = vld [vmem:[%s1 + $0x128] sm:$0xff]
    %v77 = vld [vmem:[%s1 + $0x130] sm:$0xff]
    %v78 = vld [vmem:[%s1 + $0x138] sm:$0xff]
    %v79 = vld [vmem:[%s1 + $0x140] sm:$0xff]
    %v80 = vld [vmem:[%s1 + $0x148] sm:$0xff]
    %v81 = vld [vmem:[%s1 + $0x150] sm:$0xff]
    %v82 = vld [vmem:[%s1 + $0x158] sm:$0xff]
    %v83 = vld [vmem:[%s1 + $0x160] sm:$0xff]
    %v84 = vld [vmem:[%s1 + $0x168] sm:$0xff]
    %v85 = vld [vmem:[%s1 + $0x170] sm:$0xff]
    %v86 = vld [vmem:[%s1 + $0x178] sm:$0xff]
    %v87 = vld [vmem:[%s1 + $0x180] sm:$0xff]
    %v88 = vld [vmem:[%s1 + $0x188] sm:$0xff]
    %v89 = vld [vmem:[%s1 + $0x190] sm:$0xff]
    %v90 = vld [vmem:[%s1 + $0x198] sm:$0xff]
    %v91 = vld [vmem:[%s1 + $0x1a0] sm:$0xff]
    %v92 = vld [vmem:[%s1 + $0x1a8] sm:$0xff]
    %v93 = vld [vmem:[%s1 + $0x1b0] sm:$0xff]
    %v94 = vld [vmem:[%s1 + $0x1b8] sm:$0xff]
    %v95 = vld [vmem:[%s1 + $0x1c0] sm:$0xff]
    %v96 = vld [vmem:[%s1 + $0x1c8] sm:$0xff]
    %v97 = vld [vmem:[%s1 + $0x1d0] sm:$0xff]
    %v98 = vld [vmem:[%s1 + $0x1d8] sm:$0xff]
    %v99 = vld [vmem:[%s1 + $0x1e0] sm:$0xff]
    %v100 = vld [vmem:[%s1 + $0x1e8] sm:$0xff]
    %v101 = vld [vmem:[%s1 + $0x1f0] sm:$0xff]
    %v102 = vld [vmem:[%s1 + $0x1f8] sm:$0xff]
    %v103 = vld [vmem:[%s1 + $0x200] sm:$0xff]
    %v104 = vld [vmem:[%s1 + $0x208] sm:$0xff]
    %v105 = vld [vmem:[%s1 + $0x210] sm:$0xff]
    %v106 = vld [vmem:[%s1 + $0x218] sm:$0xff]
    %v107 = vld [vmem:[%s1 + $0x220] sm:$0xff]
    %v108 = vld [vmem:[%s1 + $0x228] sm:$0xff]
    %v109 = vld [vmem:[%s1 + $0x230] sm:$0xff]
    %v110 = vld [vmem:[%s1 + $0x238] sm:$0xff]
    %v111 = vld [vmem:[%s1 + $0x240] sm:$0xff]
    %v112 = vld [vmem:[%s1 + $0x248] sm:$0xff]
    %v113 = vld [vmem:[%s1 + $0x250] sm:$0xff]
    %v114 = vld [vmem:[%s1 + $0x258] sm:$0xff]
    %v115 = vld [vmem:[%s1 + $0x260] sm:$0xff]
    %v116 = vld [vmem:[%s1 + $0x268] sm:$0xff]
    %v117 = vld [vmem:[%s1 + $0x270] sm:$0xff]
    %v118 = vld [vmem:[%s1 + $0x278] sm:$0xff]
    %v119 = vld [vmem:[%s1 + $0x280] sm:$0xff]
    %v120 = vld [vmem:[%s1 + $0x288] sm:$0xff]
    %v121 = vld [vmem:[%s1 + $0x290] sm:$0xff]
    %v122 = vld [vmem:[%s1 + $0x298] sm:$0xff]
    %v123 = vld [vmem:[%s1 + $0x2a0] sm:$0xff]
    %v124 = vld [vmem:[%s1 + $0x2a8] sm:$0xff]
    %v125 = vld [vmem:[%s1 + $0x2b0] sm:$0xff]
    %v126 = vld [vmem:[%s1 + $0x2b8] sm:$0xff]
    %v127 = vld [vmem:[%s1 + $0x2c0] sm:$0xff]
    %v128 = vld [vmem:[%s1 + $0x2c8] sm:$0xff]
    %v129 = vld [vmem:[%s1 + $0x2d0] sm:$0xff]
    %v130 = vld [vmem:[%s1 + $0x2d8] sm:$0xff]
    %v131 = vld [vmem:[%s1 + $0x2e0] sm:$0xff]
    %v132 = vld [vmem:[%s1 + $0x2e8] sm:$0xff]
    %v133 = vld [vmem:[%s1 + $0x2f0] sm:$0xff]
    %v134 = vld [vmem:[%s1 + $0x2f8] sm:$0xff]
    %v135 = vld [vmem:[%s1 + $0x300] sm:$0xff]
    %v136 = vld [vmem:[%s1 + $0x308] sm:$0xff]
    %v137 = vld [vmem:[%s2] sm:$0x3]
    %v139 = vlaneseq
    %v140 = vshrl.u32 %v139, 7
    %v141 = vsub.s32 0, %v140
    %v142 = vrot.slane %v137, %v141
    %v143 = vlaneseq
    %v144 = vshrl.u32 %v143, 7
    %v145 = vsub.s32 1, %v144
    %v146 = vrot.slane %v137, %v145
    %v247 = vunpack.c.l.b16 %v39
    %v248 = vunpack.c.h.b16 %v39
    %v249 = vunpack.c.l.b16 %v40
    %v250 = vunpack.c.h.b16 %v40
    %v251 = vunpack.c.l.b16 %v41
    %v252 = vunpack.c.h.b16 %v41
    %v253 = vunpack.c.l.b16 %v42
    %v254 = vunpack.c.h.b16 %v42
    %v255 = vunpack.c.l.b16 %v43
    %v256 = vunpack.c.h.b16 %v43
    %v257 = vunpack.c.l.b16 %v44
    %v258 = vunpack.c.h.b16 %v44
    %v259 = vunpack.c.l.b16 %v45
    %v260 = vunpack.c.h.b16 %v45
    %v261 = vunpack.c.l.b16 %v46
    %v262 = vunpack.c.h.b16 %v46
    %v263 = vunpack.c.l.b16 %v47
    %v264 = vunpack.c.h.b16 %v47
    %v265 = vunpack.c.l.b16 %v48
    %v266 = vunpack.c.h.b16 %v48
    %v267 = vunpack.c.l.b16 %v49
    %v268 = vunpack.c.h.b16 %v49
    %v269 = vunpack.c.l.b16 %v50
    %v270 = vunpack.c.h.b16 %v50
    %v271 = vunpack.c.l.b16 %v51
    %v272 = vunpack.c.h.b16 %v51
    %v273 = vunpack.c.l.b16 %v52
    %v274 = vunpack.c.h.b16 %v52
    %v275 = vunpack.c.l.b16 %v53
    %v276 = vunpack.c.h.b16 %v53
    %v277 = vunpack.c.l.b16 %v54
    %v278 = vunpack.c.h.b16 %v54
    %v279 = vunpack.c.l.b16 %v55
    %v280 = vunpack.c.h.b16 %v55
    %v281 = vunpack.c.l.b16 %v56
    %v282 = vunpack.c.h.b16 %v56
    %v283 = vunpack.c.l.b16 %v57
    %v284 = vunpack.c.h.b16 %v57
    %v285 = vunpack.c.l.b16 %v58
    %v286 = vunpack.c.h.b16 %v58
    %v287 = vunpack.c.l.b16 %v59
    %v288 = vunpack.c.h.b16 %v59
    %v289 = vunpack.c.l.b16 %v60
    %v290 = vunpack.c.h.b16 %v60
    %v291 = vunpack.c.l.b16 %v61
    %v292 = vunpack.c.h.b16 %v61
    %v293 = vunpack.c.l.b16 %v62
    %v294 = vunpack.c.h.b16 %v62
    %v295 = vunpack.c.l.b16 %v63
    %v296 = vunpack.c.h.b16 %v63
    %v297 = vunpack.c.l.b16 %v64
    %v298 = vunpack.c.h.b16 %v64
    %v299 = vunpack.c.l.b16 %v65
    %v300 = vunpack.c.h.b16 %v65
    %v301 = vunpack.c.l.b16 %v66
    %v302 = vunpack.c.h.b16 %v66
    %v303 = vunpack.c.l.b16 %v67
    %v304 = vunpack.c.h.b16 %v67
    %v305 = vunpack.c.l.b16 %v68
    %v306 = vunpack.c.h.b16 %v68
    %v307 = vunpack.c.l.b16 %v69
    %v308 = vunpack.c.h.b16 %v69
    %v309 = vunpack.c.l.b16 %v70
    %v310 = vunpack.c.h.b16 %v70
    %v311 = vunpack.c.l.b16 %v71
    %v312 = vunpack.c.h.b16 %v71
    %v313 = vunpack.c.l.b16 %v72
    %v314 = vunpack.c.h.b16 %v72
    %v315 = vunpack.c.l.b16 %v73
    %v316 = vunpack.c.h.b16 %v73
    %v317 = vunpack.c.l.b16 %v74
    %v318 = vunpack.c.h.b16 %v74
    %v319 = vunpack.c.l.b16 %v75
    %v320 = vunpack.c.h.b16 %v75
    %v321 = vunpack.c.l.b16 %v76
    %v322 = vunpack.c.h.b16 %v76
    %v323 = vunpack.c.l.b16 %v77
    %v324 = vunpack.c.h.b16 %v77
    %v325 = vunpack.c.l.b16 %v78
    %v326 = vunpack.c.h.b16 %v78
    %v327 = vunpack.c.l.b16 %v79
    %v328 = vunpack.c.h.b16 %v79
    %v329 = vunpack.c.l.b16 %v80
    %v330 = vunpack.c.h.b16 %v80
    %v331 = vunpack.c.l.b16 %v81
    %v332 = vunpack.c.h.b16 %v81
    %v333 = vunpack.c.l.b16 %v82
    %v334 = vunpack.c.h.b16 %v82
    %v335 = vunpack.c.l.b16 %v83
    %v336 = vunpack.c.h.b16 %v83
    %v337 = vunpack.c.l.b16 %v84
    %v338 = vunpack.c.h.b16 %v84
    %v339 = vunpack.c.l.b16 %v85
    %v340 = vunpack.c.h.b16 %v85
    %v341 = vunpack.c.l.b16 %v86
    %v342 = vunpack.c.h.b16 %v86
    %v343 = vunpack.c.l.b16 %v87
    %v344 = vunpack.c.h.b16 %v87
    %v345 = vunpack.c.l.b16 %v88
    %v346 = vunpack.c.h.b16 %v88
    %v347 = vunpack.c.l.b16 %v89
    %v348 = vunpack.c.h.b16 %v89
    %v349 = vunpack.c.l.b16 %v90
    %v350 = vunpack.c.h.b16 %v90
    %v351 = vunpack.c.l.b16 %v91
    %v352 = vunpack.c.h.b16 %v91
    %v353 = vunpack.c.l.b16 %v92
    %v354 = vunpack.c.h.b16 %v92
    %v355 = vunpack.c.l.b16 %v93
    %v356 = vunpack.c.h.b16 %v93
    %v357 = vunpack.c.l.b16 %v94
    %v358 = vunpack.c.h.b16 %v94
    %v359 = vunpack.c.l.b16 %v95
    %v360 = vunpack.c.h.b16 %v95
    %v361 = vunpack.c.l.b16 %v96
    %v362 = vunpack.c.h.b16 %v96
    %v363 = vunpack.c.l.b16 %v97
    %v364 = vunpack.c.h.b16 %v97
    %v365 = vunpack.c.l.b16 %v98
    %v366 = vunpack.c.h.b16 %v98
    %v367 = vunpack.c.l.b16 %v99
    %v368 = vunpack.c.h.b16 %v99
    %v369 = vunpack.c.l.b16 %v100
    %v370 = vunpack.c.h.b16 %v100
    %v371 = vunpack.c.l.b16 %v101
    %v372 = vunpack.c.h.b16 %v101
    %v373 = vunpack.c.l.b16 %v102
    %v374 = vunpack.c.h.b16 %v102
    %v375 = vunpack.c.l.b16 %v103
    %v376 = vunpack.c.h.b16 %v103
    %v377 = vunpack.c.l.b16 %v104
    %v378 = vunpack.c.h.b16 %v104
    %v379 = vunpack.c.l.b16 %v105
    %v380 = vunpack.c.h.b16 %v105
    %v381 = vunpack.c.l.b16 %v106
    %v382 = vunpack.c.h.b16 %v106
    %v383 = vunpack.c.l.b16 %v107
    %v384 = vunpack.c.h.b16 %v107
    %v385 = vunpack.c.l.b16 %v108
    %v386 = vunpack.c.h.b16 %v108
    %v387 = vunpack.c.l.b16 %v109
    %v388 = vunpack.c.h.b16 %v109
    %v389 = vunpack.c.l.b16 %v110
    %v390 = vunpack.c.h.b16 %v110
    %v391 = vunpack.c.l.b16 %v111
    %v392 = vunpack.c.h.b16 %v111
    %v393 = vunpack.c.l.b16 %v112
    %v394 = vunpack.c.h.b16 %v112
    %v395 = vunpack.c.l.b16 %v113
    %v396 = vunpack.c.h.b16 %v113
    %v397 = vunpack.c.l.b16 %v114
    %v398 = vunpack.c.h.b16 %v114
    %v399 = vunpack.c.l.b16 %v115
    %v400 = vunpack.c.h.b16 %v115
    %v401 = vunpack.c.l.b16 %v116
    %v402 = vunpack.c.h.b16 %v116
    %v403 = vunpack.c.l.b16 %v117
    %v404 = vunpack.c.h.b16 %v117
    %v405 = vunpack.c.l.b16 %v118
    %v406 = vunpack.c.h.b16 %v118
    %v407 = vunpack.c.l.b16 %v119
    %v408 = vunpack.c.h.b16 %v119
    %v409 = vunpack.c.l.b16 %v120
    %v410 = vunpack.c.h.b16 %v120
    %v411 = vunpack.c.l.b16 %v121
    %v412 = vunpack.c.h.b16 %v121
    %v413 = vunpack.c.l.b16 %v122
    %v414 = vunpack.c.h.b16 %v122
    %v415 = vunpack.c.l.b16 %v123
    %v416 = vunpack.c.h.b16 %v123
    %v417 = vunpack.c.l.b16 %v124
    %v418 = vunpack.c.h.b16 %v124
    %v419 = vunpack.c.l.b16 %v125
    %v420 = vunpack.c.h.b16 %v125
    %v421 = vunpack.c.l.b16 %v126
    %v422 = vunpack.c.h.b16 %v126
    %v423 = vunpack.c.l.b16 %v127
    %v424 = vunpack.c.h.b16 %v127
    %v425 = vunpack.c.l.b16 %v128
    %v426 = vunpack.c.h.b16 %v128
    %v427 = vunpack.c.l.b16 %v129
    %v428 = vunpack.c.h.b16 %v129
    %v429 = vunpack.c.l.b16 %v130
    %v430 = vunpack.c.h.b16 %v130
    %v431 = vunpack.c.l.b16 %v131
    %v432 = vunpack.c.h.b16 %v131
    %v433 = vunpack.c.l.b16 %v132
    %v434 = vunpack.c.h.b16 %v132
    %v435 = vunpack.c.l.b16 %v133
    %v436 = vunpack.c.h.b16 %v133
    %v437 = vunpack.c.l.b16 %v134
    %v438 = vunpack.c.h.b16 %v134
    %v439 = vunpack.c.l.b16 %v135
    %v440 = vunpack.c.h.b16 %v135
    %v441 = vunpack.c.l.b16 %v136
    %v442 = vunpack.c.h.b16 %v136
    %v443 = vpack.c.b16 %v249, %v247
    %v444 = vpack.c.b16 %v250, %v248
    %v445 = vpack.c.b16 %v253, %v251
    %v446 = vpack.c.b16 %v254, %v252
    %v447 = vpack.c.b16 %v257, %v255
    %v448 = vpack.c.b16 %v258, %v256
    %v449 = vpack.c.b16 %v261, %v259
    %v450 = vpack.c.b16 %v262, %v260
    %v451 = vpack.c.b16 %v265, %v263
    %v452 = vpack.c.b16 %v266, %v264
    %v453 = vpack.c.b16 %v269, %v267
    %v454 = vpack.c.b16 %v270, %v268
    %v455 = vpack.c.b16 %v273, %v271
    %v456 = vpack.c.b16 %v274, %v272
    %v457 = vpack.c.b16 %v277, %v275
    %v458 = vpack.c.b16 %v278, %v276
    %v459 = vpack.c.b16 %v281, %v279
    %v460 = vpack.c.b16 %v282, %v280
    %v461 = vpack.c.b16 %v285, %v283
    %v462 = vpack.c.b16 %v286, %v284
    %v463 = vpack.c.b16 %v289, %v287
    %v464 = vpack.c.b16 %v290, %v288
    %v465 = vpack.c.b16 %v293, %v291
    %v466 = vpack.c.b16 %v294, %v292
    %v467 = vpack.c.b16 %v297, %v295
    %v468 = vpack.c.b16 %v298, %v296
    %v469 = vpack.c.b16 %v301, %v299
    %v470 = vpack.c.b16 %v302, %v300
    %v471 = vpack.c.b16 %v305, %v303
    %v472 = vpack.c.b16 %v306, %v304
    %v473 = vpack.c.b16 %v309, %v307
    %v474 = vpack.c.b16 %v310, %v308
    %v475 = vpack.c.b16 %v313, %v311
    %v476 = vpack.c.b16 %v314, %v312
    %v477 = vpack.c.b16 %v317, %v315
    %v478 = vpack.c.b16 %v318, %v316
    %v479 = vpack.c.b16 %v321, %v319
    %v480 = vpack.c.b16 %v322, %v320
    %v481 = vpack.c.b16 %v325, %v323
    %v482 = vpack.c.b16 %v326, %v324
    %v483 = vpack.c.b16 %v329, %v327
    %v484 = vpack.c.b16 %v330, %v328
    %v485 = vpack.c.b16 %v333, %v331
    %v486 = vpack.c.b16 %v334, %v332
    %v487 = vpack.c.b16 %v337, %v335
    %v488 = vpack.c.b16 %v338, %v336
    %v489 = vpack.c.b16 %v341, %v339
    %v490 = vpack.c.b16 %v342, %v340
    %v491 = vpack.c.b16 %v345, %v343
    %v492 = vpack.c.b16 %v346, %v344
    %v493 = vpack.c.b16 %v349, %v347
    %v494 = vpack.c.b16 %v350, %v348
    %v495 = vpack.c.b16 %v353, %v351
    %v496 = vpack.c.b16 %v354, %v352
    %v497 = vpack.c.b16 %v357, %v355
    %v498 = vpack.c.b16 %v358, %v356
    %v499 = vpack.c.b16 %v361, %v359
    %v500 = vpack.c.b16 %v362, %v360
    %v501 = vpack.c.b16 %v365, %v363
    %v502 = vpack.c.b16 %v366, %v364
    %v503 = vpack.c.b16 %v369, %v367
    %v504 = vpack.c.b16 %v370, %v368
    %v505 = vpack.c.b16 %v373, %v371
    %v506 = vpack.c.b16 %v374, %v372
    %v507 = vpack.c.b16 %v377, %v375
    %v508 = vpack.c.b16 %v378, %v376
    %v509 = vpack.c.b16 %v381, %v379
    %v510 = vpack.c.b16 %v382, %v380
    %v511 = vpack.c.b16 %v385, %v383
    %v512 = vpack.c.b16 %v386, %v384
    %v513 = vpack.c.b16 %v389, %v387
    %v514 = vpack.c.b16 %v390, %v388
    %v515 = vpack.c.b16 %v393, %v391
    %v516 = vpack.c.b16 %v394, %v392
    %v517 = vpack.c.b16 %v397, %v395
    %v518 = vpack.c.b16 %v398, %v396
    %v519 = vpack.c.b16 %v401, %v399
    %v520 = vpack.c.b16 %v402, %v400
    %v521 = vpack.c.b16 %v405, %v403
    %v522 = vpack.c.b16 %v406, %v404
    %v523 = vpack.c.b16 %v409, %v407
    %v524 = vpack.c.b16 %v410, %v408
    %v525 = vpack.c.b16 %v413, %v411
    %v526 = vpack.c.b16 %v414, %v412
    %v527 = vpack.c.b16 %v417, %v415
    %v528 = vpack.c.b16 %v418, %v416
    %v529 = vpack.c.b16 %v421, %v419
    %v530 = vpack.c.b16 %v422, %v420
    %v531 = vpack.c.b16 %v425, %v423
    %v532 = vpack.c.b16 %v426, %v424
    %v533 = vpack.c.b16 %v429, %v427
    %v534 = vpack.c.b16 %v430, %v428
    %v535 = vpack.c.b16 %v433, %v431
    %v536 = vpack.c.b16 %v434, %v432
    %v537 = vpack.c.b16 %v437, %v435
    %v538 = vpack.c.b16 %v438, %v436
    %v539 = vpack.c.b16 %v441, %v439
    %v540 = vpack.c.b16 %v442, %v440
    %vm639 = vcmask 130048
    %v641 = vsel %vm639, %v38, 0
    %643 = vmatprep.subr.bf16.mxu0 %v458
    %644 = vmatpush1.bf16.msra.mxu0 %v457
    %645 = vmatprep.subr.bf16.mxu0 %v456
    %646 = vmatpush1.bf16.msra.mxu0 %v455
    %647 = vmatprep.subr.bf16.mxu0 %v454
    %648 = vmatpush1.bf16.msra.mxu0 %v453
    %649 = vmatprep.subr.bf16.mxu0 %v452
    %650 = vmatpush1.bf16.msra.mxu0 %v451
    %651 = vmatprep.subr.bf16.mxu0 %v450
    %652 = vmatpush1.bf16.msra.mxu0 %v449
    %653 = vmatprep.subr.bf16.mxu0 %v448
    %654 = vmatpush1.bf16.msra.mxu0 %v447
    %655 = vmatprep.subr.bf16.mxu0 %v446
    %656 = vmatpush1.bf16.msra.mxu0 %v445
    %657 = vmatprep.subr.bf16.mxu0 %v444
    %658 = vmatpush1.bf16.msra.mxu0 %v443
    %659 = vmatprep.subr.bf16.mxu0 %v474
    %660 = vmatpush2.bf16.msra.mxu0 %v473
    %661 = vmatprep.subr.bf16.mxu0 %v472
    %662 = vmatpush2.bf16.msra.mxu0 %v471
    %663 = vmatprep.subr.bf16.mxu0 %v470
    %664 = vmatpush2.bf16.msra.mxu0 %v469
    %665 = vmatprep.subr.bf16.mxu0 %v468
    %666 = vmatpush2.bf16.msra.mxu0 %v467
    %667 = vmatprep.subr.bf16.mxu0 %v466
    %668 = vmatpush2.bf16.msra.mxu0 %v465
    %669 = vmatprep.subr.bf16.mxu0 %v464
    %670 = vmatpush2.bf16.msra.mxu0 %v463
    %671 = vmatprep.subr.bf16.mxu0 %v462
    %672 = vmatpush2.bf16.msra.mxu0 %v461
    %673 = vmatprep.subr.bf16.mxu0 %v460
    %674 = vmatpush2.bf16.msra.mxu0 %v459
    %675 = vmatprep.mubr.bf16.mxu0 %v33
    %676 = vmatmul.mubr.bf16.gmra.mxu0 %v32
    %v677 = vpop.f32.mrf.mxu0
    %v678 = vadd.f32 %v142, %v677
    %v679 = vpop.f32.mrf.mxu0
    %v680 = vadd.f32 %v146, %v679
    %v681 = vpop.f32.mrf.mxu0
    %v682 = vpop.f32.mrf.mxu0
    %683 = vdwg.mxu0
    %684 = vmatprep.subr.bf16.mxu0 %v490
    %685 = vmatpush1.bf16.msra.mxu0 %v489
    %686 = vmatprep.subr.bf16.mxu0 %v488
    %687 = vmatpush1.bf16.msra.mxu0 %v487
    %688 = vmatprep.subr.bf16.mxu0 %v486
    %689 = vmatpush1.bf16.msra.mxu0 %v485
    %690 = vmatprep.subr.bf16.mxu0 %v484
    %691 = vmatpush1.bf16.msra.mxu0 %v483
    %692 = vmatprep.subr.bf16.mxu0 %v482
    %693 = vmatpush1.bf16.msra.mxu0 %v481
    %694 = vmatprep.subr.bf16.mxu0 %v480
    %695 = vmatpush1.bf16.msra.mxu0 %v479
    %696 = vmatprep.subr.bf16.mxu0 %v478
    %697 = vmatpush1.bf16.msra.mxu0 %v477
    %698 = vmatprep.subr.bf16.mxu0 %v476
    %699 = vmatpush1.bf16.msra.mxu0 %v475
    %700 = vmatprep.subr.bf16.mxu0 %v506
    %701 = vmatpush2.bf16.msra.mxu0 %v505
    %702 = vmatprep.subr.bf16.mxu0 %v504
    %703 = vmatpush2.bf16.msra.mxu0 %v503
    %704 = vmatprep.subr.bf16.mxu0 %v502
    %705 = vmatpush2.bf16.msra.mxu0 %v501
    %706 = vmatprep.subr.bf16.mxu0 %v500
    %707 = vmatpush2.bf16.msra.mxu0 %v499
    %708 = vmatprep.subr.bf16.mxu0 %v498
    %709 = vmatpush2.bf16.msra.mxu0 %v497
    %710 = vmatprep.subr.bf16.mxu0 %v496
    %711 = vmatpush2.bf16.msra.mxu0 %v495
    %712 = vmatprep.subr.bf16.mxu0 %v494
    %713 = vmatpush2.bf16.msra.mxu0 %v493
    %714 = vmatprep.subr.bf16.mxu0 %v492
    %715 = vmatpush2.bf16.msra.mxu0 %v491
    %716 = vmatprep.mubr.bf16.mxu0 %v35
    %717 = vmatmul.mubr.bf16.gmra.mxu0 %v34
    %v718 = vpop.f32.mrf.mxu0
    %v719 = vadd.f32 %v678, %v718
    %v720 = vpop.f32.mrf.mxu0
    %v721 = vadd.f32 %v680, %v720
    %v722 = vpop.f32.mrf.mxu0
    %v723 = vpop.f32.mrf.mxu0
    %724 = vdwg.mxu0
    %725 = vmatprep.subr.bf16.mxu0 %v522
    %726 = vmatpush1.bf16.msra.mxu0 %v521
    %727 = vmatprep.subr.bf16.mxu0 %v520
    %728 = vmatpush1.bf16.msra.mxu0 %v519
    %729 = vmatprep.subr.bf16.mxu0 %v518
    %730 = vmatpush1.bf16.msra.mxu0 %v517
    %731 = vmatprep.subr.bf16.mxu0 %v516
    %732 = vmatpush1.bf16.msra.mxu0 %v515
    %733 = vmatprep.subr.bf16.mxu0 %v514
    %734 = vmatpush1.bf16.msra.mxu0 %v513
    %735 = vmatprep.subr.bf16.mxu0 %v512
    %736 = vmatpush1.bf16.msra.mxu0 %v511
    %737 = vmatprep.subr.bf16.mxu0 %v510
    %738 = vmatpush1.bf16.msra.mxu0 %v509
    %739 = vmatprep.subr.bf16.mxu0 %v508
    %740 = vmatpush1.bf16.msra.mxu0 %v507
    %741 = vmatprep.subr.bf16.mxu0 %v538
    %742 = vmatpush2.bf16.msra.mxu0 %v537
    %743 = vmatprep.subr.bf16.mxu0 %v536
    %744 = vmatpush2.bf16.msra.mxu0 %v535
    %745 = vmatprep.subr.bf16.mxu0 %v534
    %746 = vmatpush2.bf16.msra.mxu0 %v533
    %747 = vmatprep.subr.bf16.mxu0 %v532
    %748 = vmatpush2.bf16.msra.mxu0 %v531
    %749 = vmatprep.subr.bf16.mxu0 %v530
    %750 = vmatpush2.bf16.msra.mxu0 %v529
    %751 = vmatprep.subr.bf16.mxu0 %v528
    %752 = vmatpush2.bf16.msra.mxu0 %v527
    %753 = vmatprep.subr.bf16.mxu0 %v526
    %754 = vmatpush2.bf16.msra.mxu0 %v525
    %755 = vmatprep.subr.bf16.mxu0 %v524
    %756 = vmatpush2.bf16.msra.mxu0 %v523
    %757 = vmatprep.mubr.bf16.mxu0 %v37
    %758 = vmatmul.mubr.bf16.gmra.mxu0 %v36
    %v759 = vpop.f32.mrf.mxu0
    %v760 = vadd.f32 %v719, %v759
    %v761 = vpop.f32.mrf.mxu0
    %v762 = vadd.f32 %v721, %v761
    %v763 = vpop.f32.mrf.mxu0
    %v764 = vpop.f32.mrf.mxu0
    %765 = vdwg.mxu0
    %766 = vmatprep.subr.bf16.mxu0 0
    %767 = vmatpush1.bf16.msra.mxu0 0
    %768 = vmatprep.subr.bf16.mxu0 0
    %769 = vmatpush1.bf16.msra.mxu0 0
    %770 = vmatprep.subr.bf16.mxu0 0
    %771 = vmatpush1.bf16.msra.mxu0 0
    %772 = vmatprep.subr.bf16.mxu0 0
    %773 = vmatpush1.bf16.msra.mxu0 0
    %774 = vmatprep.subr.bf16.mxu0 0
    %775 = vmatpush1.bf16.msra.mxu0 0
    %776 = vmatprep.subr.bf16.mxu0 0
    %777 = vmatpush1.bf16.msra.mxu0 0
    %778 = vmatprep.subr.bf16.mxu0 0
    %779 = vmatpush1.bf16.msra.mxu0 0
    %780 = vmatprep.subr.bf16.mxu0 %v540
    %781 = vmatpush1.bf16.msra.mxu0 %v539
    %782 = vmatprep.subr.bf16.mxu0 0
    %783 = vmatpush2.bf16.msra.mxu0 0
    %784 = vmatprep.subr.bf16.mxu0 0
    %785 = vmatpush2.bf16.msra.mxu0 0
    %786 = vmatprep.subr.bf16.mxu0 0
    %787 = vmatpush2.bf16.msra.mxu0 0
    %788 = vmatprep.subr.bf16.mxu0 0
    %789 = vmatpush2.bf16.msra.mxu0 0
    %790 = vmatprep.subr.bf16.mxu0 0
    %791 = vmatpush2.bf16.msra.mxu0 0
    %792 = vmatprep.subr.bf16.mxu0 0
    %793 = vmatpush2.bf16.msra.mxu0 0
    %794 = vmatprep.subr.bf16.mxu0 0
    %795 = vmatpush2.bf16.msra.mxu0 0
    %796 = vmatprep.subr.bf16.mxu0 0
    %797 = vmatpush2.bf16.msra.mxu0 0
    %798 = vmatprep.mubr.bf16.mxu0 0
    %799 = vmatmul.mubr.bf16.gmra.mxu0 %v641
    %v800 = vpop.f32.mrf.mxu0
    %v801 = vadd.f32 %v760, %v800
    %v802 = vpop.f32.mrf.mxu0
    %v803 = vadd.f32 %v762, %v802
    %v804 = vpop.f32.mrf.mxu0
    %v805 = vpop.f32.mrf.mxu0
    %806 = vdwg.mxu0
    %v807 = vtanh.pop %v801
    %v808 = vtanh.pop %v803
    %809 = vst [vmem:[#allocation2] sm:$0xff] %v807
    %810 = vst [vmem:[#allocation2 + $0x8] sm:$0xff] %v808
    %v811 = vpack.c.bf16 %v807, %v807
    %v812 = vpack.c.bf16 %v808, %v808
    %v813 = vld [vmem:[%s3] sm:$0xff]
    %v814 = vld [vmem:[%s3 + $0x8] sm:$0xff]
    %v815 = vld [vmem:[%s3 + $0x10] sm:$0xff]
    %v816 = vld [vmem:[%s3 + $0x18] sm:$0xf]
    %v817 = vld [vmem:[%s3 + $0x1c] sm:$0xff]
    %v818 = vld [vmem:[%s3 + $0x24] sm:$0xff]
    %v819 = vld [vmem:[%s3 + $0x2c] sm:$0xff]
    %v820 = vld [vmem:[%s3 + $0x34] sm:$0xf]
    %v821 = vld [vmem:[%s3 + $0x38] sm:$0xff]
    %v822 = vld [vmem:[%s3 + $0x40] sm:$0xff]
    %v823 = vld [vmem:[%s3 + $0x48] sm:$0xff]
    %v824 = vld [vmem:[%s3 + $0x50] sm:$0xf]
    %v825 = vld [vmem:[%s3 + $0x54] sm:$0xff]
    %v826 = vld [vmem:[%s3 + $0x5c] sm:$0xff]
    %v827 = vld [vmem:[%s3 + $0x64] sm:$0xff]
    %v828 = vld [vmem:[%s3 + $0x6c] sm:$0xf]
    %v829 = vld [vmem:[%s3 + $0x70] sm:$0xff]
    %v830 = vld [vmem:[%s3 + $0x78] sm:$0xff]
    %v831 = vld [vmem:[%s3 + $0x80] sm:$0xff]
    %v832 = vld [vmem:[%s3 + $0x88] sm:$0xf]
    %v833 = vld [vmem:[%s3 + $0x8c] sm:$0xff]
    %v834 = vld [vmem:[%s3 + $0x94] sm:$0xff]
    %v835 = vld [vmem:[%s3 + $0x9c] sm:$0xff]
    %v836 = vld [vmem:[%s3 + $0xa4] sm:$0xf]
    %v837 = vld [vmem:[%s3 + $0xa8] sm:$0xff]
    %v838 = vld [vmem:[%s3 + $0xb0] sm:$0xff]
    %v839 = vld [vmem:[%s3 + $0xb8] sm:$0xff]
    %v840 = vld [vmem:[%s3 + $0xc0] sm:$0xf]
    %v841 = vld [vmem:[%s3 + $0xc4] sm:$0xff]
    %v842 = vld [vmem:[%s3 + $0xcc] sm:$0xff]
    %v843 = vld [vmem:[%s3 + $0xd4] sm:$0xff]
    %v844 = vld [vmem:[%s3 + $0xdc] sm:$0xf]
    %v845 = vld [vmem:[%s3 + $0xe0] sm:$0xff]
    %v846 = vld [vmem:[%s3 + $0xe8] sm:$0xff]
    %v847 = vld [vmem:[%s3 + $0xf0] sm:$0xff]
    %v848 = vld [vmem:[%s3 + $0xf8] sm:$0xf]
    %v849 = vld [vmem:[%s3 + $0xfc] sm:$0xff]
    %v850 = vld [vmem:[%s3 + $0x104] sm:$0xff]
    %v851 = vld [vmem:[%s3 + $0x10c] sm:$0xff]
    %v852 = vld [vmem:[%s3 + $0x114] sm:$0xf]
    %v853 = vld [vmem:[%s3 + $0x118] sm:$0xff]
    %v854 = vld [vmem:[%s3 + $0x120] sm:$0xff]
    %v855 = vld [vmem:[%s3 + $0x128] sm:$0xff]
    %v856 = vld [vmem:[%s3 + $0x130] sm:$0xf]
    %v857 = vld [vmem:[%s3 + $0x134] sm:$0xff]
    %v858 = vld [vmem:[%s3 + $0x13c] sm:$0xff]
    %v859 = vld [vmem:[%s3 + $0x144] sm:$0xff]
    %v860 = vld [vmem:[%s3 + $0x14c] sm:$0xf]
    %v861 = vld [vmem:[%s3 + $0x150] sm:$0xff]
    %v862 = vld [vmem:[%s3 + $0x158] sm:$0xff]
    %v863 = vld [vmem:[%s3 + $0x160] sm:$0xff]
    %v864 = vld [vmem:[%s3 + $0x168] sm:$0xf]
    %v865 = vld [vmem:[%s3 + $0x16c] sm:$0xff]
    %v866 = vld [vmem:[%s3 + $0x174] sm:$0xff]
    %v867 = vld [vmem:[%s3 + $0x17c] sm:$0xff]
    %v868 = vld [vmem:[%s3 + $0x184] sm:$0xf]
    %v869 = vld [vmem:[%s3 + $0x188] sm:$0xff]
    %v870 = vld [vmem:[%s3 + $0x190] sm:$0xff]
    %v871 = vld [vmem:[%s3 + $0x198] sm:$0xff]
    %v872 = vld [vmem:[%s3 + $0x1a0] sm:$0xf]
    %v873 = vld [vmem:[%s3 + $0x1a4] sm:$0xff]
    %v874 = vld [vmem:[%s3 + $0x1ac] sm:$0xff]
    %v875 = vld [vmem:[%s3 + $0x1b4] sm:$0xff]
    %v876 = vld [vmem:[%s3 + $0x1bc] sm:$0xf]
    %v877 = vld [vmem:[%s3 + $0x1c0] sm:$0xff]
    %v878 = vld [vmem:[%s3 + $0x1c8] sm:$0xff]
    %v879 = vld [vmem:[%s3 + $0x1d0] sm:$0xff]
    %v880 = vld [vmem:[%s3 + $0x1d8] sm:$0xf]
    %v881 = vld [vmem:[%s3 + $0x1dc] sm:$0xff]
    %v882 = vld [vmem:[%s3 + $0x1e4] sm:$0xff]
    %v883 = vld [vmem:[%s3 + $0x1ec] sm:$0xff]
    %v884 = vld [vmem:[%s3 + $0x1f4] sm:$0xf]
    %v885 = vld [vmem:[%s3 + $0x1f8] sm:$0xff]
    %v886 = vld [vmem:[%s3 + $0x200] sm:$0xff]
    %v887 = vld [vmem:[%s3 + $0x208] sm:$0xff]
    %v888 = vld [vmem:[%s3 + $0x210] sm:$0xf]
    %v889 = vld [vmem:[%s3 + $0x214] sm:$0xff]
    %v890 = vld [vmem:[%s3 + $0x21c] sm:$0xff]
    %v891 = vld [vmem:[%s3 + $0x224] sm:$0xff]
    %v892 = vld [vmem:[%s3 + $0x22c] sm:$0xf]
    %v893 = vld [vmem:[%s3 + $0x230] sm:$0xff]
    %v894 = vld [vmem:[%s3 + $0x238] sm:$0xff]
    %v895 = vld [vmem:[%s3 + $0x240] sm:$0xff]
    %v896 = vld [vmem:[%s3 + $0x248] sm:$0xf]
    %v897 = vld [vmem:[%s3 + $0x24c] sm:$0xff]
    %v898 = vld [vmem:[%s3 + $0x254] sm:$0xff]
    %v899 = vld [vmem:[%s3 + $0x25c] sm:$0xff]
    %v900 = vld [vmem:[%s3 + $0x264] sm:$0xf]
    %v901 = vld [vmem:[%s3 + $0x268] sm:$0xff]
    %v902 = vld [vmem:[%s3 + $0x270] sm:$0xff]
    %v903 = vld [vmem:[%s3 + $0x278] sm:$0xff]
    %v904 = vld [vmem:[%s3 + $0x280] sm:$0xf]
    %v905 = vld [vmem:[%s3 + $0x284] sm:$0xff]
    %v906 = vld [vmem:[%s3 + $0x28c] sm:$0xff]
    %v907 = vld [vmem:[%s3 + $0x294] sm:$0xff]
    %v908 = vld [vmem:[%s3 + $0x29c] sm:$0xf]
    %v909 = vld [vmem:[%s3 + $0x2a0] sm:$0xff]
    %v910 = vld [vmem:[%s3 + $0x2a8] sm:$0xff]
    %v911 = vld [vmem:[%s3 + $0x2b0] sm:$0xff]
    %v912 = vld [vmem:[%s3 + $0x2b8] sm:$0xf]
    %v913 = vld [vmem:[%s3 + $0x2bc] sm:$0xff]
    %v914 = vld [vmem:[%s3 + $0x2c4] sm:$0xff]
    %v915 = vld [vmem:[%s3 + $0x2cc] sm:$0xff]
    %v916 = vld [vmem:[%s3 + $0x2d4] sm:$0xf]
    %v917 = vld [vmem:[%s3 + $0x2d8] sm:$0xff]
    %v918 = vld [vmem:[%s3 + $0x2e0] sm:$0xff]
    %v919 = vld [vmem:[%s3 + $0x2e8] sm:$0xff]
    %v920 = vld [vmem:[%s3 + $0x2f0] sm:$0xf]
    %v921 = vld [vmem:[%s3 + $0x2f4] sm:$0xff]
    %v922 = vld [vmem:[%s3 + $0x2fc] sm:$0xff]
    %v923 = vld [vmem:[%s3 + $0x304] sm:$0xff]
    %v924 = vld [vmem:[%s3 + $0x30c] sm:$0xf]
    %v925 = vld [vmem:[%s3 + $0x310] sm:$0xff]
    %v926 = vld [vmem:[%s3 + $0x318] sm:$0xff]
    %v927 = vld [vmem:[%s3 + $0x320] sm:$0xff]
    %v928 = vld [vmem:[%s3 + $0x328] sm:$0xf]
    %v929 = vld [vmem:[%s3 + $0x32c] sm:$0xff]
    %v930 = vld [vmem:[%s3 + $0x334] sm:$0xff]
    %v931 = vld [vmem:[%s3 + $0x33c] sm:$0xff]
    %v932 = vld [vmem:[%s3 + $0x344] sm:$0xf]
    %v933 = vld [vmem:[%s3 + $0x348] sm:$0xff]
    %v934 = vld [vmem:[%s3 + $0x350] sm:$0xff]
    %v935 = vld [vmem:[%s3 + $0x358] sm:$0xff]
    %v936 = vld [vmem:[%s3 + $0x360] sm:$0xf]
    %v937 = vld [vmem:[%s3 + $0x364] sm:$0xff]
    %v938 = vld [vmem:[%s3 + $0x36c] sm:$0xff]
    %v939 = vld [vmem:[%s3 + $0x374] sm:$0xff]
    %v940 = vld [vmem:[%s3 + $0x37c] sm:$0xf]
    %v941 = vld [vmem:[%s4] sm:$0x7f]
    %v943 = vlaneseq
    %v944 = vshrl.u32 %v943, 7
    %v945 = vsub.s32 0, %v944
    %v946 = vrot.slane %v941, %v945
    %v947 = vlaneseq
    %v948 = vshrl.u32 %v947, 7
    %v949 = vsub.s32 1, %v948
    %v950 = vrot.slane %v941, %v949
    %v951 = vlaneseq
    %v952 = vshrl.u32 %v951, 7
    %v953 = vsub.s32 2, %v952
    %v954 = vrot.slane %v941, %v953
    %v955 = vlaneseq
    %v956 = vshrl.u32 %v955, 7
    %v957 = vsub.s32 3, %v956
    %v958 = vrot.slane %v941, %v957
    %v959 = vlaneseq
    %v960 = vshrl.u32 %v959, 7
    %v961 = vsub.s32 4, %v960
    %v962 = vrot.slane %v941, %v961
    %v963 = vlaneseq
    %v964 = vshrl.u32 %v963, 7
    %v965 = vsub.s32 5, %v964
    %v966 = vrot.slane %v941, %v965
    %v967 = vlaneseq
    %v968 = vshrl.u32 %v967, 7
    %v969 = vsub.s32 6, %v968
    %v970 = vrot.slane %v941, %v969
    %v1106 = vunpack.c.l.b16 %v813
    %v1107 = vunpack.c.h.b16 %v813
    %v1108 = vunpack.c.l.b16 %v814
    %v1109 = vunpack.c.h.b16 %v814
    %v1110 = vunpack.c.l.b16 %v815
    %v1111 = vunpack.c.h.b16 %v815
    %v1112 = vunpack.c.l.b16 %v816
    %v1113 = vunpack.c.l.b16 %v817
    %v1114 = vunpack.c.h.b16 %v817
    %v1115 = vunpack.c.l.b16 %v818
    %v1116 = vunpack.c.h.b16 %v818
    %v1117 = vunpack.c.l.b16 %v819
    %v1118 = vunpack.c.h.b16 %v819
    %v1119 = vunpack.c.l.b16 %v820
    %v1120 = vunpack.c.l.b16 %v821
    %v1121 = vunpack.c.h.b16 %v821
    %v1122 = vunpack.c.l.b16 %v822
    %v1123 = vunpack.c.h.b16 %v822
    %v1124 = vunpack.c.l.b16 %v823
    %v1125 = vunpack.c.h.b16 %v823
    %v1126 = vunpack.c.l.b16 %v824
    %v1127 = vunpack.c.l.b16 %v825
    %v1128 = vunpack.c.h.b16 %v825
    %v1129 = vunpack.c.l.b16 %v826
    %v1130 = vunpack.c.h.b16 %v826
    %v1131 = vunpack.c.l.b16 %v827
    %v1132 = vunpack.c.h.b16 %v827
    %v1133 = vunpack.c.l.b16 %v828
    %v1134 = vunpack.c.l.b16 %v829
    %v1135 = vunpack.c.h.b16 %v829
    %v1136 = vunpack.c.l.b16 %v830
    %v1137 = vunpack.c.h.b16 %v830
    %v1138 = vunpack.c.l.b16 %v831
    %v1139 = vunpack.c.h.b16 %v831
    %v1140 = vunpack.c.l.b16 %v832
    %v1141 = vunpack.c.l.b16 %v833
    %v1142 = vunpack.c.h.b16 %v833
    %v1143 = vunpack.c.l.b16 %v834
    %v1144 = vunpack.c.h.b16 %v834
    %v1145 = vunpack.c.l.b16 %v835
    %v1146 = vunpack.c.h.b16 %v835
    %v1147 = vunpack.c.l.b16 %v836
    %v1148 = vunpack.c.l.b16 %v837
    %v1149 = vunpack.c.h.b16 %v837
    %v1150 = vunpack.c.l.b16 %v838
    %v1151 = vunpack.c.h.b16 %v838
    %v1152 = vunpack.c.l.b16 %v839
    %v1153 = vunpack.c.h.b16 %v839
    %v1154 = vunpack.c.l.b16 %v840
    %v1155 = vunpack.c.l.b16 %v841
    %v1156 = vunpack.c.h.b16 %v841
    %v1157 = vunpack.c.l.b16 %v842
    %v1158 = vunpack.c.h.b16 %v842
    %v1159 = vunpack.c.l.b16 %v843
    %v1160 = vunpack.c.h.b16 %v843
    %v1161 = vunpack.c.l.b16 %v844
    %v1162 = vunpack.c.l.b16 %v845
    %v1163 = vunpack.c.h.b16 %v845
    %v1164 = vunpack.c.l.b16 %v846
    %v1165 = vunpack.c.h.b16 %v846
    %v1166 = vunpack.c.l.b16 %v847
    %v1167 = vunpack.c.h.b16 %v847
    %v1168 = vunpack.c.l.b16 %v848
    %v1169 = vunpack.c.l.b16 %v849
    %v1170 = vunpack.c.h.b16 %v849
    %v1171 = vunpack.c.l.b16 %v850
    %v1172 = vunpack.c.h.b16 %v850
    %v1173 = vunpack.c.l.b16 %v851
    %v1174 = vunpack.c.h.b16 %v851
    %v1175 = vunpack.c.l.b16 %v852
    %v1176 = vunpack.c.l.b16 %v853
    %v1177 = vunpack.c.h.b16 %v853
    %v1178 = vunpack.c.l.b16 %v854
    %v1179 = vunpack.c.h.b16 %v854
    %v1180 = vunpack.c.l.b16 %v855
    %v1181 = vunpack.c.h.b16 %v855
    %v1182 = vunpack.c.l.b16 %v856
    %v1183 = vunpack.c.l.b16 %v857
    %v1184 = vunpack.c.h.b16 %v857
    %v1185 = vunpack.c.l.b16 %v858
    %v1186 = vunpack.c.h.b16 %v858
    %v1187 = vunpack.c.l.b16 %v859
    %v1188 = vunpack.c.h.b16 %v859
    %v1189 = vunpack.c.l.b16 %v860
    %v1190 = vunpack.c.l.b16 %v861
    %v1191 = vunpack.c.h.b16 %v861
    %v1192 = vunpack.c.l.b16 %v862
    %v1193 = vunpack.c.h.b16 %v862
    %v1194 = vunpack.c.l.b16 %v863
    %v1195 = vunpack.c.h.b16 %v863
    %v1196 = vunpack.c.l.b16 %v864
    %v1197 = vunpack.c.l.b16 %v865
    %v1198 = vunpack.c.h.b16 %v865
    %v1199 = vunpack.c.l.b16 %v866
    %v1200 = vunpack.c.h.b16 %v866
    %v1201 = vunpack.c.l.b16 %v867
    %v1202 = vunpack.c.h.b16 %v867
    %v1203 = vunpack.c.l.b16 %v868
    %v1204 = vunpack.c.l.b16 %v869
    %v1205 = vunpack.c.h.b16 %v869
    %v1206 = vunpack.c.l.b16 %v870
    %v1207 = vunpack.c.h.b16 %v870
    %v1208 = vunpack.c.l.b16 %v871
    %v1209 = vunpack.c.h.b16 %v871
    %v1210 = vunpack.c.l.b16 %v872
    %v1211 = vunpack.c.l.b16 %v873
    %v1212 = vunpack.c.h.b16 %v873
    %v1213 = vunpack.c.l.b16 %v874
    %v1214 = vunpack.c.h.b16 %v874
    %v1215 = vunpack.c.l.b16 %v875
    %v1216 = vunpack.c.h.b16 %v875
    %v1217 = vunpack.c.l.b16 %v876
    %v1218 = vunpack.c.l.b16 %v877
    %v1219 = vunpack.c.h.b16 %v877
    %v1220 = vunpack.c.l.b16 %v878
    %v1221 = vunpack.c.h.b16 %v878
    %v1222 = vunpack.c.l.b16 %v879
    %v1223 = vunpack.c.h.b16 %v879
    %v1224 = vunpack.c.l.b16 %v880
    %v1225 = vunpack.c.l.b16 %v881
    %v1226 = vunpack.c.h.b16 %v881
    %v1227 = vunpack.c.l.b16 %v882
    %v1228 = vunpack.c.h.b16 %v882
    %v1229 = vunpack.c.l.b16 %v883
    %v1230 = vunpack.c.h.b16 %v883
    %v1231 = vunpack.c.l.b16 %v884
    %v1232 = vunpack.c.l.b16 %v885
    %v1233 = vunpack.c.h.b16 %v885
    %v1234 = vunpack.c.l.b16 %v886
    %v1235 = vunpack.c.h.b16 %v886
    %v1236 = vunpack.c.l.b16 %v887
    %v1237 = vunpack.c.h.b16 %v887
    %v1238 = vunpack.c.l.b16 %v888
    %v1239 = vunpack.c.l.b16 %v889
    %v1240 = vunpack.c.h.b16 %v889
    %v1241 = vunpack.c.l.b16 %v890
    %v1242 = vunpack.c.h.b16 %v890
    %v1243 = vunpack.c.l.b16 %v891
    %v1244 = vunpack.c.h.b16 %v891
    %v1245 = vunpack.c.l.b16 %v892
    %v1246 = vunpack.c.l.b16 %v893
    %v1247 = vunpack.c.h.b16 %v893
    %v1248 = vunpack.c.l.b16 %v894
    %v1249 = vunpack.c.h.b16 %v894
    %v1250 = vunpack.c.l.b16 %v895
    %v1251 = vunpack.c.h.b16 %v895
    %v1252 = vunpack.c.l.b16 %v896
    %v1253 = vunpack.c.l.b16 %v897
    %v1254 = vunpack.c.h.b16 %v897
    %v1255 = vunpack.c.l.b16 %v898
    %v1256 = vunpack.c.h.b16 %v898
    %v1257 = vunpack.c.l.b16 %v899
    %v1258 = vunpack.c.h.b16 %v899
    %v1259 = vunpack.c.l.b16 %v900
    %v1260 = vunpack.c.l.b16 %v901
    %v1261 = vunpack.c.h.b16 %v901
    %v1262 = vunpack.c.l.b16 %v902
    %v1263 = vunpack.c.h.b16 %v902
    %v1264 = vunpack.c.l.b16 %v903
    %v1265 = vunpack.c.h.b16 %v903
    %v1266 = vunpack.c.l.b16 %v904
    %v1267 = vunpack.c.l.b16 %v905
    %v1268 = vunpack.c.h.b16 %v905
    %v1269 = vunpack.c.l.b16 %v906
    %v1270 = vunpack.c.h.b16 %v906
    %v1271 = vunpack.c.l.b16 %v907
    %v1272 = vunpack.c.h.b16 %v907
    %v1273 = vunpack.c.l.b16 %v908
    %v1274 = vunpack.c.l.b16 %v909
    %v1275 = vunpack.c.h.b16 %v909
    %v1276 = vunpack.c.l.b16 %v910
    %v1277 = vunpack.c.h.b16 %v910
    %v1278 = vunpack.c.l.b16 %v911
    %v1279 = vunpack.c.h.b16 %v911
    %v1280 = vunpack.c.l.b16 %v912
    %v1281 = vunpack.c.l.b16 %v913
    %v1282 = vunpack.c.h.b16 %v913
    %v1283 = vunpack.c.l.b16 %v914
    %v1284 = vunpack.c.h.b16 %v914
    %v1285 = vunpack.c.l.b16 %v915
    %v1286 = vunpack.c.h.b16 %v915
    %v1287 = vunpack.c.l.b16 %v916
    %v1288 = vunpack.c.l.b16 %v917
    %v1289 = vunpack.c.h.b16 %v917
    %v1290 = vunpack.c.l.b16 %v918
    %v1291 = vunpack.c.h.b16 %v918
    %v1292 = vunpack.c.l.b16 %v919
    %v1293 = vunpack.c.h.b16 %v919
    %v1294 = vunpack.c.l.b16 %v920
    %v1295 = vunpack.c.l.b16 %v921
    %v1296 = vunpack.c.h.b16 %v921
    %v1297 = vunpack.c.l.b16 %v922
    %v1298 = vunpack.c.h.b16 %v922
    %v1299 = vunpack.c.l.b16 %v923
    %v1300 = vunpack.c.h.b16 %v923
    %v1301 = vunpack.c.l.b16 %v924
    %v1302 = vunpack.c.l.b16 %v925
    %v1303 = vunpack.c.h.b16 %v925
    %v1304 = vunpack.c.l.b16 %v926
    %v1305 = vunpack.c.h.b16 %v926
    %v1306 = vunpack.c.l.b16 %v927
    %v1307 = vunpack.c.h.b16 %v927
    %v1308 = vunpack.c.l.b16 %v928
    %v1309 = vunpack.c.l.b16 %v929
    %v1310 = vunpack.c.h.b16 %v929
    %v1311 = vunpack.c.l.b16 %v930
    %v1312 = vunpack.c.h.b16 %v930
    %v1313 = vunpack.c.l.b16 %v931
    %v1314 = vunpack.c.h.b16 %v931
    %v1315 = vunpack.c.l.b16 %v932
    %v1316 = vunpack.c.l.b16 %v933
    %v1317 = vunpack.c.h.b16 %v933
    %v1318 = vunpack.c.l.b16 %v934
    %v1319 = vunpack.c.h.b16 %v934
    %v1320 = vunpack.c.l.b16 %v935
    %v1321 = vunpack.c.h.b16 %v935
    %v1322 = vunpack.c.l.b16 %v936
    %v1323 = vunpack.c.l.b16 %v937
    %v1324 = vunpack.c.h.b16 %v937
    %v1325 = vunpack.c.l.b16 %v938
    %v1326 = vunpack.c.h.b16 %v938
    %v1327 = vunpack.c.l.b16 %v939
    %v1328 = vunpack.c.h.b16 %v939
    %v1329 = vunpack.c.l.b16 %v940
    %v1330 = vpack.c.b16 %v1113, %v1106
    %v1331 = vpack.c.b16 %v1114, %v1107
    %v1332 = vpack.c.b16 %v1115, %v1108
    %v1333 = vpack.c.b16 %v1116, %v1109
    %v1334 = vpack.c.b16 %v1117, %v1110
    %v1335 = vpack.c.b16 %v1118, %v1111
    %v1336 = vpack.c.b16 %v1119, %v1112
    %v1337 = vpack.c.b16 %v1127, %v1120
    %v1338 = vpack.c.b16 %v1128, %v1121
    %v1339 = vpack.c.b16 %v1129, %v1122
    %v1340 = vpack.c.b16 %v1130, %v1123
    %v1341 = vpack.c.b16 %v1131, %v1124
    %v1342 = vpack.c.b16 %v1132, %v1125
    %v1343 = vpack.c.b16 %v1133, %v1126
    %v1344 = vpack.c.b16 %v1141, %v1134
    %v1345 = vpack.c.b16 %v1142, %v1135
    %v1346 = vpack.c.b16 %v1143, %v1136
    %v1347 = vpack.c.b16 %v1144, %v1137
    %v1348 = vpack.c.b16 %v1145, %v1138
    %v1349 = vpack.c.b16 %v1146, %v1139
    %v1350 = vpack.c.b16 %v1147, %v1140
    %v1351 = vpack.c.b16 %v1155, %v1148
    %v1352 = vpack.c.b16 %v1156, %v1149
    %v1353 = vpack.c.b16 %v1157, %v1150
    %v1354 = vpack.c.b16 %v1158, %v1151
    %v1355 = vpack.c.b16 %v1159, %v1152
    %v1356 = vpack.c.b16 %v1160, %v1153
    %v1357 = vpack.c.b16 %v1161, %v1154
    %v1358 = vpack.c.b16 %v1169, %v1162
    %v1359 = vpack.c.b16 %v1170, %v1163
    %v1360 = vpack.c.b16 %v1171, %v1164
    %v1361 = vpack.c.b16 %v1172, %v1165
    %v1362 = vpack.c.b16 %v1173, %v1166
    %v1363 = vpack.c.b16 %v1174, %v1167
    %v1364 = vpack.c.b16 %v1175, %v1168
    %v1365 = vpack.c.b16 %v1183, %v1176
    %v1366 = vpack.c.b16 %v1184, %v1177
    %v1367 = vpack.c.b16 %v1185, %v1178
    %v1368 = vpack.c.b16 %v1186, %v1179
    %v1369 = vpack.c.b16 %v1187, %v1180
    %v1370 = vpack.c.b16 %v1188, %v1181
    %v1371 = vpack.c.b16 %v1189, %v1182
    %v1372 = vpack.c.b16 %v1197, %v1190
    %v1373 = vpack.c.b16 %v1198, %v1191
    %v1374 = vpack.c.b16 %v1199, %v1192
    %v1375 = vpack.c.b16 %v1200, %v1193
    %v1376 = vpack.c.b16 %v1201, %v1194
    %v1377 = vpack.c.b16 %v1202, %v1195
    %v1378 = vpack.c.b16 %v1203, %v1196
    %v1379 = vpack.c.b16 %v1211, %v1204
    %v1380 = vpack.c.b16 %v1212, %v1205
    %v1381 = vpack.c.b16 %v1213, %v1206
    %v1382 = vpack.c.b16 %v1214, %v1207
    %v1383 = vpack.c.b16 %v1215, %v1208
    %v1384 = vpack.c.b16 %v1216, %v1209
    %v1385 = vpack.c.b16 %v1217, %v1210
    %v1386 = vpack.c.b16 %v1225, %v1218
    %v1387 = vpack.c.b16 %v1226, %v1219
    %v1388 = vpack.c.b16 %v1227, %v1220
    %v1389 = vpack.c.b16 %v1228, %v1221
    %v1390 = vpack.c.b16 %v1229, %v1222
    %v1391 = vpack.c.b16 %v1230, %v1223
    %v1392 = vpack.c.b16 %v1231, %v1224
    %v1393 = vpack.c.b16 %v1239, %v1232
    %v1394 = vpack.c.b16 %v1240, %v1233
    %v1395 = vpack.c.b16 %v1241, %v1234
    %v1396 = vpack.c.b16 %v1242, %v1235
    %v1397 = vpack.c.b16 %v1243, %v1236
    %v1398 = vpack.c.b16 %v1244, %v1237
    %v1399 = vpack.c.b16 %v1245, %v1238
    %v1400 = vpack.c.b16 %v1253, %v1246
    %v1401 = vpack.c.b16 %v1254, %v1247
    %v1402 = vpack.c.b16 %v1255, %v1248
    %v1403 = vpack.c.b16 %v1256, %v1249
    %v1404 = vpack.c.b16 %v1257, %v1250
    %v1405 = vpack.c.b16 %v1258, %v1251
    %v1406 = vpack.c.b16 %v1259, %v1252
    %v1407 = vpack.c.b16 %v1267, %v1260
    %v1408 = vpack.c.b16 %v1268, %v1261
    %v1409 = vpack.c.b16 %v1269, %v1262
    %v1410 = vpack.c.b16 %v1270, %v1263
    %v1411 = vpack.c.b16 %v1271, %v1264
    %v1412 = vpack.c.b16 %v1272, %v1265
    %v1413 = vpack.c.b16 %v1273, %v1266
    %v1414 = vpack.c.b16 %v1281, %v1274
    %v1415 = vpack.c.b16 %v1282, %v1275
    %v1416 = vpack.c.b16 %v1283, %v1276
    %v1417 = vpack.c.b16 %v1284, %v1277
    %v1418 = vpack.c.b16 %v1285, %v1278
    %v1419 = vpack.c.b16 %v1286, %v1279
    %v1420 = vpack.c.b16 %v1287, %v1280
    %v1421 = vpack.c.b16 %v1295, %v1288
    %v1422 = vpack.c.b16 %v1296, %v1289
    %v1423 = vpack.c.b16 %v1297, %v1290
    %v1424 = vpack.c.b16 %v1298, %v1291
    %v1425 = vpack.c.b16 %v1299, %v1292
    %v1426 = vpack.c.b16 %v1300, %v1293
    %v1427 = vpack.c.b16 %v1301, %v1294
    %v1428 = vpack.c.b16 %v1309, %v1302
    %v1429 = vpack.c.b16 %v1310, %v1303
    %v1430 = vpack.c.b16 %v1311, %v1304
    %v1431 = vpack.c.b16 %v1312, %v1305
    %v1432 = vpack.c.b16 %v1313, %v1306
    %v1433 = vpack.c.b16 %v1314, %v1307
    %v1434 = vpack.c.b16 %v1315, %v1308
    %v1435 = vpack.c.b16 %v1323, %v1316
    %v1436 = vpack.c.b16 %v1324, %v1317
    %v1437 = vpack.c.b16 %v1325, %v1318
    %v1438 = vpack.c.b16 %v1326, %v1319
    %v1439 = vpack.c.b16 %v1327, %v1320
    %v1440 = vpack.c.b16 %v1328, %v1321
    %v1441 = vpack.c.b16 %v1329, %v1322
    %1554 = vmatprep.subr.bf16.mxu0 %v1380
    %1555 = vmatpush1.bf16.msra.mxu0 %v1379
    %1556 = vmatprep.subr.bf16.mxu0 %v1373
    %1557 = vmatpush1.bf16.msra.mxu0 %v1372
    %1558 = vmatprep.subr.bf16.mxu0 %v1366
    %1559 = vmatpush1.bf16.msra.mxu0 %v1365
    %1560 = vmatprep.subr.bf16.mxu0 %v1359
    %1561 = vmatpush1.bf16.msra.mxu0 %v1358
    %1562 = vmatprep.subr.bf16.mxu0 %v1352
    %1563 = vmatpush1.bf16.msra.mxu0 %v1351
    %1564 = vmatprep.subr.bf16.mxu0 %v1345
    %1565 = vmatpush1.bf16.msra.mxu0 %v1344
    %1566 = vmatprep.subr.bf16.mxu0 %v1338
    %1567 = vmatpush1.bf16.msra.mxu0 %v1337
    %1568 = vmatprep.subr.bf16.mxu0 %v1331
    %1569 = vmatpush1.bf16.msra.mxu0 %v1330
    %1570 = vmatprep.subr.bf16.mxu0 %v1436
    %1571 = vmatpush2.bf16.msra.mxu0 %v1435
    %1572 = vmatprep.subr.bf16.mxu0 %v1429
    %1573 = vmatpush2.bf16.msra.mxu0 %v1428
    %1574 = vmatprep.subr.bf16.mxu0 %v1422
    %1575 = vmatpush2.bf16.msra.mxu0 %v1421
    %1576 = vmatprep.subr.bf16.mxu0 %v1415
    %1577 = vmatpush2.bf16.msra.mxu0 %v1414
    %1578 = vmatprep.subr.bf16.mxu0 %v1408
    %1579 = vmatpush2.bf16.msra.mxu0 %v1407
    %1580 = vmatprep.subr.bf16.mxu0 %v1401
    %1581 = vmatpush2.bf16.msra.mxu0 %v1400
    %1582 = vmatprep.subr.bf16.mxu0 %v1394
    %1583 = vmatpush2.bf16.msra.mxu0 %v1393
    %1584 = vmatprep.subr.bf16.mxu0 %v1387
    %1585 = vmatpush2.bf16.msra.mxu0 %v1386
    %1586 = vmatprep.mubr.bf16.mxu0 %v812
    %1587 = vmatmul.mubr.bf16.gmra.mxu0 %v811
    %v1588 = vpop.f32.mrf.mxu0
    %v1589 = vadd.f32 %v946, %v1588
    %v1590 = vpop.f32.mrf.mxu0
    %v1591 = vadd.f32 %v950, %v1590
    %v1592 = vpop.f32.mrf.mxu0
    %v1593 = vpop.f32.mrf.mxu0
    %1594 = vdwg.mxu0
    %1595 = vmatprep.subr.bf16.mxu0 %v1382
    %1596 = vmatpush1.bf16.msra.mxu0 %v1381
    %1597 = vmatprep.subr.bf16.mxu0 %v1375
    %1598 = vmatpush1.bf16.msra.mxu0 %v1374
    %1599 = vmatprep.subr.bf16.mxu0 %v1368
    %1600 = vmatpush1.bf16.msra.mxu0 %v1367
    %1601 = vmatprep.subr.bf16.mxu0 %v1361
    %1602 = vmatpush1.bf16.msra.mxu0 %v1360
    %1603 = vmatprep.subr.bf16.mxu0 %v1354
    %1604 = vmatpush1.bf16.msra.mxu0 %v1353
    %1605 = vmatprep.subr.bf16.mxu0 %v1347
    %1606 = vmatpush1.bf16.msra.mxu0 %v1346
    %1607 = vmatprep.subr.bf16.mxu0 %v1340
    %1608 = vmatpush1.bf16.msra.mxu0 %v1339
    %1609 = vmatprep.subr.bf16.mxu0 %v1333
    %1610 = vmatpush1.bf16.msra.mxu0 %v1332
    %1611 = vmatprep.subr.bf16.mxu0 %v1438
    %1612 = vmatpush2.bf16.msra.mxu0 %v1437
    %1613 = vmatprep.subr.bf16.mxu0 %v1431
    %1614 = vmatpush2.bf16.msra.mxu0 %v1430
    %1615 = vmatprep.subr.bf16.mxu0 %v1424
    %1616 = vmatpush2.bf16.msra.mxu0 %v1423
    %1617 = vmatprep.subr.bf16.mxu0 %v1417
    %1618 = vmatpush2.bf16.msra.mxu0 %v1416
    %1619 = vmatprep.subr.bf16.mxu0 %v1410
    %1620 = vmatpush2.bf16.msra.mxu0 %v1409
    %1621 = vmatprep.subr.bf16.mxu0 %v1403
    %1622 = vmatpush2.bf16.msra.mxu0 %v1402
    %1623 = vmatprep.subr.bf16.mxu0 %v1396
    %1624 = vmatpush2.bf16.msra.mxu0 %v1395
    %1625 = vmatprep.subr.bf16.mxu0 %v1389
    %1626 = vmatpush2.bf16.msra.mxu0 %v1388
    %1627 = vmatprep.mubr.bf16.mxu0 %v812
    %1628 = vmatmul.mubr.bf16.gmra.mxu0 %v811
    %v1629 = vpop.f32.mrf.mxu0
    %v1630 = vadd.f32 %v954, %v1629
    %v1631 = vpop.f32.mrf.mxu0
    %v1632 = vadd.f32 %v958, %v1631
    %v1633 = vpop.f32.mrf.mxu0
    %v1634 = vpop.f32.mrf.mxu0
    %1635 = vdwg.mxu0
    %1636 = vmatprep.subr.bf16.mxu0 %v1384
    %1637 = vmatpush1.bf16.msra.mxu0 %v1383
    %1638 = vmatprep.subr.bf16.mxu0 %v1377
    %1639 = vmatpush1.bf16.msra.mxu0 %v1376
    %1640 = vmatprep.subr.bf16.mxu0 %v1370
    %1641 = vmatpush1.bf16.msra.mxu0 %v1369
    %1642 = vmatprep.subr.bf16.mxu0 %v1363
    %1643 = vmatpush1.bf16.msra.mxu0 %v1362
    %1644 = vmatprep.subr.bf16.mxu0 %v1356
    %1645 = vmatpush1.bf16.msra.mxu0 %v1355
    %1646 = vmatprep.subr.bf16.mxu0 %v1349
    %1647 = vmatpush1.bf16.msra.mxu0 %v1348
    %1648 = vmatprep.subr.bf16.mxu0 %v1342
    %1649 = vmatpush1.bf16.msra.mxu0 %v1341
    %1650 = vmatprep.subr.bf16.mxu0 %v1335
    %1651 = vmatpush1.bf16.msra.mxu0 %v1334
    %1652 = vmatprep.subr.bf16.mxu0 %v1440
    %1653 = vmatpush2.bf16.msra.mxu0 %v1439
    %1654 = vmatprep.subr.bf16.mxu0 %v1433
    %1655 = vmatpush2.bf16.msra.mxu0 %v1432
    %1656 = vmatprep.subr.bf16.mxu0 %v1426
    %1657 = vmatpush2.bf16.msra.mxu0 %v1425
    %1658 = vmatprep.subr.bf16.mxu0 %v1419
    %1659 = vmatpush2.bf16.msra.mxu0 %v1418
    %1660 = vmatprep.subr.bf16.mxu0 %v1412
    %1661 = vmatpush2.bf16.msra.mxu0 %v1411
    %1662 = vmatprep.subr.bf16.mxu0 %v1405
    %1663 = vmatpush2.bf16.msra.mxu0 %v1404
    %1664 = vmatprep.subr.bf16.mxu0 %v1398
    %1665 = vmatpush2.bf16.msra.mxu0 %v1397
    %1666 = vmatprep.subr.bf16.mxu0 %v1391
    %1667 = vmatpush2.bf16.msra.mxu0 %v1390
    %1668 = vmatprep.mubr.bf16.mxu0 %v812
    %1669 = vmatmul.mubr.bf16.gmra.mxu0 %v811
    %v1670 = vpop.f32.mrf.mxu0
    %v1671 = vadd.f32 %v962, %v1670
    %v1672 = vpop.f32.mrf.mxu0
    %v1673 = vadd.f32 %v966, %v1672
    %v1674 = vpop.f32.mrf.mxu0
    %v1675 = vpop.f32.mrf.mxu0
    %1676 = vdwg.mxu0
    %1677 = vmatprep.subr.bf16.mxu0 0
    %1678 = vmatpush1.bf16.msra.mxu0 %v1385
    %1679 = vmatprep.subr.bf16.mxu0 0
    %1680 = vmatpush1.bf16.msra.mxu0 %v1378
    %1681 = vmatprep.subr.bf16.mxu0 0
    %1682 = vmatpush1.bf16.msra.mxu0 %v1371
    %1683 = vmatprep.subr.bf16.mxu0 0
    %1684 = vmatpush1.bf16.msra.mxu0 %v1364
    %1685 = vmatprep.subr.bf16.mxu0 0
    %1686 = vmatpush1.bf16.msra.mxu0 %v1357
    %1687 = vmatprep.subr.bf16.mxu0 0
    %1688 = vmatpush1.bf16.msra.mxu0 %v1350
    %1689 = vmatprep.subr.bf16.mxu0 0
    %1690 = vmatpush1.bf16.msra.mxu0 %v1343
    %1691 = vmatprep.subr.bf16.mxu0 0
    %1692 = vmatpush1.bf16.msra.mxu0 %v1336
    %1693 = vmatprep.subr.bf16.mxu0 0
    %1694 = vmatpush2.bf16.msra.mxu0 %v1441
    %1695 = vmatprep.subr.bf16.mxu0 0
    %1696 = vmatpush2.bf16.msra.mxu0 %v1434
    %1697 = vmatprep.subr.bf16.mxu0 0
    %1698 = vmatpush2.bf16.msra.mxu0 %v1427
    %1699 = vmatprep.subr.bf16.mxu0 0
    %1700 = vmatpush2.bf16.msra.mxu0 %v1420
    %1701 = vmatprep.subr.bf16.mxu0 0
    %1702 = vmatpush2.bf16.msra.mxu0 %v1413
    %1703 = vmatprep.subr.bf16.mxu0 0
    %1704 = vmatpush2.bf16.msra.mxu0 %v1406
    %1705 = vmatprep.subr.bf16.mxu0 0
    %1706 = vmatpush2.bf16.msra.mxu0 %v1399
    %1707 = vmatprep.subr.bf16.mxu0 0
    %1708 = vmatpush2.bf16.msra.mxu0 %v1392
    %1709 = vmatprep.mubr.bf16.mxu0 %v812
    %1710 = vmatmul.mubr.bf16.gmra.mxu0 %v811
    %v1711 = vpop.f32.mrf.mxu0
    %v1712 = vadd.f32 %v970, %v1711
    %v1713 = vpop.f32.mrf.mxu0
    %v1714 = vpop.f32.mrf.mxu0
    %v1715 = vpop.f32.mrf.mxu0
    %1716 = vdwg.mxu0
    %1717 = vst [vmem:[#allocation4] sm:$0xff] %v1589
    %1718 = vst [vmem:[#allocation4 + $0x8] sm:$0xff] %v1591
    %1719 = vst [vmem:[#allocation4 + $0x10] sm:$0xff] %v1630
    %1720 = vst [vmem:[#allocation4 + $0x18] sm:$0xff] %v1632
    %1721 = vst [vmem:[#allocation4 + $0x20] sm:$0xff] %v1671
    %1722 = vst [vmem:[#allocation4 + $0x28] sm:$0xff] %v1673
    %1723 = vst.msk [vmem:[#allocation4 + $0x30] sm:$0xff] %vm639, %v1712
    // Predicated region
    $region22: #{tpu_custom_call.1} parent=1 // pred_check
      _
    $region23: #{tpu_custom_call.1} parent=1 // pred_check_branch
      %1725 = sbr.rel (0) target = $region25
    $region24: #{tpu_custom_call.1} parent=1 // pred_region
      %s1727 = ssub.s32 256, 256
      %1728 = vsyncadd [#allocation3], %s1727
      %s1730 = sshll.u32 [#allocation2], 4
      %s1731 = int_to_ptr.vmem [resolvable:$true] %s1730
      %1733 = dma.vmem_to_hbm [thread:$0]  %s1731, 256, %s5, [#allocation3]
    $region25: #{tpu_custom_call.1} parent=1 // pred_fallthru
      _
    // Predicated region
    $region26: #{tpu_custom_call.1} parent=1 // pred_check
      _
    $region27: #{tpu_custom_call.1} parent=1 // pred_check_branch
      %1735 = sbr.rel (0) target = $region29
    $region28: #{tpu_custom_call.1} parent=1 // pred_region
      %s1737 = ssub.s32 896, 896
      %1738 = vsyncadd [#allocation5], %s1737
      %s1740 = sshll.u32 [#allocation4], 4
      %s1741 = int_to_ptr.vmem [resolvable:$true] %s1740
      %1743 = dma.vmem_to_hbm [thread:$0]  %s1741, 896, %s6, [#allocation5]
    $region29: #{tpu_custom_call.1} parent=1 // pred_fallthru
      _
    // Predicated region
    $region30: #{tpu_custom_call.1} parent=1 // pred_check
      _
    $region31: #{tpu_custom_call.1} parent=1 // pred_check_branch
      %1745 = sbr.rel (0) target = $region33
    $region32: #{tpu_custom_call.1} parent=1 // pred_region
      %1746 = dma.done [#allocation3], 256
    $region33: #{tpu_custom_call.1} parent=1 // pred_fallthru
      _
    // Predicated region
    $region34: #{tpu_custom_call.1} parent=1 // pred_check
      _
    $region35: #{tpu_custom_call.1} parent=1 // pred_check_branch
      %1748 = sbr.rel (0) target = $region37
    $region36: #{tpu_custom_call.1} parent=1 // pred_region
      %1749 = dma.done [#allocation5], 896
    $region37: #{tpu_custom_call.1} parent=1 // pred_fallthru
      _
    %1750 = vsyncpa [#allocation3], 1
    %1751 = vsyncpa [#allocation5], 1

</llo_original>
